<compile_context>
chip_gen: v7x
topology: tpu7x:2x2x1
jax: 0.10.0
libtpu: 0.0.40
codegen_flags: <defaults>
</compile_context>

<pallas_src>
import math

import jax
import jax.numpy as jnp
from jax.experimental import pallas as pl
from jax.experimental.pallas import tpu as pltpu

_TARGET_BLOCK_BYTES = 512 * 1024   # ~0.5 MiB of payload per input block
_MAX_BLOCK_ROWS = 4096             # keeps lane-padded VMEM tiles small for tiny D


def _round_up(n, m):
    return ((n + m - 1) // m) * m


def _sigmoid_flow_kernel(x_ref, y_ref, logdet_ref):
    x = x_ref[...]                               # (TB, D) f32
    s = 1.0 / (1.0 + jnp.exp(-x))                # sigmoid: EUP exp + VPU add/div
    y_ref[...] = s                               # contiguous (TB, D) store
    log_jac = jnp.log(s * (1.0 - s))             # log d(sigmoid)/dx  (EUP log)
    # Per-row reduction over the (small) feature dim -> (TB, 1) column output.
    logdet_ref[...] = jnp.sum(log_jac, axis=-1, keepdims=True)


def _pick_block_rows(batch_rows, d):
    b8 = _round_up(max(batch_rows, 1), 8)
    row_bytes = 4 * max(d, 1)
    tb = _TARGET_BLOCK_BYTES // row_bytes
    tb = max(8, min(_MAX_BLOCK_ROWS, tb))
    tb = min(tb, b8)
    if tb >= 128:
        tb = (tb // 128) * 128                   # lane-friendly row counts for big tiles
    return _round_up(tb, 8)


def sigmoid_flow_direct(x, *, block_rows=None):
    """Sigmoid flow forward ('direct' mode): returns (sigmoid(x), logdet)."""
    lead, d = x.shape[:-1], x.shape[-1]
    b = math.prod(lead) if lead else 1
    x2 = x.reshape(b, d).astype(jnp.float32)

    if block_rows is None:
        tb = _pick_block_rows(b, d)
    else:
        tb = _round_up(max(8, min(block_rows, _round_up(b, 8))), 8)
    bp = _round_up(b, tb)

    # Pad only the batch axis (zero-copy fast path when already tile-aligned).
    xp = x2 if bp == b else jnp.zeros((bp, d), jnp.float32).at[:b].set(x2)

    cost = pl.CostEstimate(
        flops=7 * bp * d,                        # neg/add/div/sub/mul + row-sum adds
        transcendentals=2 * bp * d,              # exp + log per element
        bytes_accessed=4 * (2 * bp * d + bp),
    )

    y_pad, logdet_pad = pl.pallas_call(
        _sigmoid_flow_kernel,
        out_shape=(
            jax.ShapeDtypeStruct((bp, d), jnp.float32),
            jax.ShapeDtypeStruct((bp, 1), jnp.float32),
        ),
        grid=(bp // tb,),
        in_specs=[pl.BlockSpec((tb, d), lambda i: (i, 0))],
        out_specs=(
            pl.BlockSpec((tb, d), lambda i: (i, 0)),
            pl.BlockSpec((tb, 1), lambda i: (i, 0)),
        ),
        compiler_params=pltpu.CompilerParams(
            dimension_semantics=("parallel",),
        ),
        cost_estimate=cost,
    )(xp)

    y = y_pad[:b].reshape(*lead, d)
    logdet = logdet_pad[:b].reshape(*lead, 1)
    return y, logdet


def _reference_direct(x):
    """Pure-JAX reference matching the PyTorch module ('direct' mode)."""
    xf = x.astype(jnp.float32)
    s = 1.0 / (1.0 + jnp.exp(-xf))
    return s, jnp.sum(jnp.log(s * (1.0 - s)), axis=-1, keepdims=True)


if __name__ == "__main__":
    key = jax.random.PRNGKey(0)
    k1, k2 = jax.random.split(key)

    # Case 1: (B, D) with an explicit small tile -> 4 pipelined grid steps.
    x1 = jax.random.normal(k1, (256, 8), dtype=jnp.float32)
    y1, ld1 = sigmoid_flow_direct(x1, block_rows=64)
    jax.block_until_ready((y1, ld1))
    y1_ref, ld1_ref = _reference_direct(x1)
    assert y1.shape == (256, 8) and ld1.shape == (256, 1)
    assert jnp.allclose(y1, y1_ref, atol=1e-6, rtol=1e-6)
    assert jnp.allclose(ld1, ld1_ref, atol=1e-5, rtol=1e-5)

    # Case 2: leading batch dims + non-multiple-of-8 rows -> padded single block.
    x2 = jax.random.normal(k2, (3, 37, 8), dtype=jnp.float32)
    y2, ld2 = sigmoid_flow_direct(x2)
    jax.block_until_ready((y2, ld2))
    y2_ref, ld2_ref = _reference_direct(x2)
    assert y2.shape == (3, 37, 8) and ld2.shape == (3, 37, 1)
    assert jnp.allclose(y2, y2_ref, atol=1e-6, rtol=1e-6)
    assert jnp.allclose(ld2, ld2_ref, atol=1e-5, rtol=1e-5)

    print("KERNEL_OK")
</pallas_src>

<mosaic_0001>
module attributes {stable_mosaic.version = 11 : i64} {
  func.func @_sigmoid_flow_kernel(%arg0: i32, %arg1: memref<64x8xf32, #tpu.memory_space<vmem>>, %arg2: memref<64x8xf32, #tpu.memory_space<vmem>>, %arg3: memref<64x1xf32, #tpu.memory_space<vmem>>) attributes {dimension_semantics = [#tpu.dimension_semantics<parallel>], iteration_bounds = array<i64: 4>, scalar_prefetch = 0 : i64, scratch_operands = 0 : i64, tpu.core_type = #tpu.core_type<tc>, window_params = [{transform_indices = @transform_0, window_bounds = array<i64: 64, 8>}, {transform_indices = @transform_1, window_bounds = array<i64: 64, 8>}, {transform_indices = @transform_2, window_bounds = array<i64: 64, 1>}]} {
    %c0 = arith.constant 0 : index
    %c0_0 = arith.constant 0 : index
    %0 = vector.load %arg1[%c0, %c0_0] : memref<64x8xf32, #tpu.memory_space<vmem>>, vector<64x8xf32>
    %cst = arith.constant 0.000000e+00 : f32
    %1 = vector.broadcast %cst : f32 to vector<64x8xf32>
    %2 = arith.subf %1, %0 : vector<64x8xf32>
    %3 = math.exp %2 : vector<64x8xf32>
    %cst_1 = arith.constant 1.000000e+00 : f32
    %4 = vector.broadcast %cst_1 : f32 to vector<64x8xf32>
    %5 = arith.addf %4, %3 : vector<64x8xf32>
    %cst_2 = arith.constant 1.000000e+00 : f32
    %6 = vector.broadcast %cst_2 : f32 to vector<64x8xf32>
    %7 = arith.divf %6, %5 : vector<64x8xf32>
    %c0_3 = arith.constant 0 : index
    %c0_4 = arith.constant 0 : index
    %8 = vector.load %arg2[%c0_3, %c0_4] : memref<64x8xf32, #tpu.memory_space<vmem>>, vector<64x8xf32>
    tpu.vector_store %arg2[%c0_3, %c0_4], %7 {strides = array<i32>} : memref<64x8xf32, #tpu.memory_space<vmem>>, vector<64x8xf32>,
    %cst_5 = arith.constant 1.000000e+00 : f32
    %9 = vector.broadcast %cst_5 : f32 to vector<64x8xf32>
    %10 = arith.subf %9, %7 : vector<64x8xf32>
    %11 = arith.mulf %7, %10 : vector<64x8xf32>
    %12 = math.log %11 : vector<64x8xf32>
    %cst_6 = arith.constant dense<0.000000e+00> : vector<64xf32>
    %13 = vector.multi_reduction <add>, %12, %cst_6 [1] : vector<64x8xf32> to vector<64xf32>
    %14 = vector.shape_cast %13 : vector<64xf32> to vector<64x1xf32>
    %c0_7 = arith.constant 0 : index
    %c0_8 = arith.constant 0 : index
    %15 = vector.load %arg3[%c0_7, %c0_8] : memref<64x1xf32, #tpu.memory_space<vmem>>, vector<64x1xf32>
    tpu.vector_store %arg3[%c0_7, %c0_8], %14 {strides = array<i32>} : memref<64x1xf32, #tpu.memory_space<vmem>>, vector<64x1xf32>,
    return
  }
  func.func @transform_0(%arg0: i32) -> (i32, i32) {
    %c0_i32 = arith.constant 0 : i32
    %c0_i32_0 = arith.constant 0 : i32
    return %arg0, %c0_i32 : i32, i32
  }
  func.func @transform_1(%arg0: i32) -> (i32, i32) {
    %c0_i32 = arith.constant 0 : i32
    %c0_i32_0 = arith.constant 0 : i32
    return %arg0, %c0_i32 : i32, i32
  }
  func.func @transform_2(%arg0: i32) -> (i32, i32) {
    %c0_i32 = arith.constant 0 : i32
    %c0_i32_0 = arith.constant 0 : i32
    return %arg0, %c0_i32 : i32, i32
  }
}

</mosaic_0001>

<llo_original>
// kernel: tpu_custom_call.1
$region0: #{tpu_custom_call.1}
  #allocation0 [shape = 'u32[]', space=smem, size = 0x4, offset = 0x4, fixed_abs, tag = 'smem constant byte address 0x4 - core index']
  #allocation1 [shape = 'u32[144,128]{1,0:T(1,128)}', space=vmem, size = 0x12000, scoped, tag = 'internal scratch']
  %s0 = inlined_call_operand.vmem [shape: f32[256,8], index: 0, kind: input, shape index: {}]
  %s1 = inlined_call_operand.vmem [shape: f32[256,8], index: 1, kind: output, shape index: {0}]
  %s2 = inlined_call_operand.vmem [shape: f32[256,1], index: 2, kind: output, shape index: {1}]
  %3 = xla_tuple %s1, %s2
  %s4 = sld [smem:[#allocation0]]
  $region45: #{tpu_custom_call.1} parent=0
    _
  %s6 = ssub.s32 1, %s4
  %s7 = scalar_select 0, %s6, %s4
  loop: start=0, step=1, limit=6
  $region2: #{tpu_custom_call.1} parent=0 // loop_pre_header
    _
  $region3: #{tpu_custom_call.1} parent=0 // loop_header
    %s9 = sphi 0, %s13
    %p10 = scmp.ge.s32.totalorder %s9, 6
    %s19 = sphi 0, %s21
    %s22 = sphi 0, %s19
    %s23 = sphi 0, %s22
    %s39 = sphi 0, %s23
    %s45 = sphi 0, %s47
    %s48 = sphi 0, %s45
    %s49 = sphi 0, %s48
    %s65 = sphi 0, %s49
    %s71 = sphi 0, %s73
    %s74 = sphi 0, %s71
    %s75 = sphi 0, %s74
    %s91 = sphi 0, %s75
  $region4: #{tpu_custom_call.1} parent=0 // loop_header_branch
    %12 = sbr.rel (%p10) target = $region8
  $region5: #{tpu_custom_call.1} parent=0 // loop_body
    %s14 = ssub.s32 %s9, 1
    %s15 = ssub.s32 %s9, 2
    %s16 = sadd.s32 %s9, 1
    %s17 = ssub.s32 %s9, %s16
    %p18 = scmp.eq.s32.totalorder %s17, 0
    %s20 = sadd.s32 %s19, 1
    %s21 = scalar_select %p18, %s19, %s20
    %p24 = pneg %p18
    %p25 = scmp.eq.s32.totalorder %s9, 3
    %p26 = por %p24, %p25
    %p27 = scmp.ne.s32.totalorder %s19, %s22
    %p28 = scmp.eq.s32.totalorder %s9, 0
    %p29 = por %p27, %p28
    %p30 = scmp.ne.s32.totalorder %s19, %s22
    %p31 = scmp.eq.s32.totalorder %s14, 3
    %p32 = por %p30, %p31
    %p33 = scmp.ne.s32.totalorder %s22, %s23
    %p34 = scmp.eq.s32.totalorder %s14, 0
    %p35 = por %p33, %p34
    %p36 = scmp.ne.s32.totalorder %s22, %s23
    %p37 = scmp.eq.s32.totalorder %s15, 3
    %p38 = por %p36, %p37
    %p40 = scmp.ne.s32.totalorder %s23, %s39
    %p41 = scmp.eq.s32.totalorder %s15, 0
    %p42 = por %p40, %p41
    %s43 = ssub.s32 %s9, %s16
    %p44 = scmp.eq.s32.totalorder %s43, 0
    %s46 = sadd.s32 %s45, 1
    %s47 = scalar_select %p44, %s45, %s46
    %p50 = pneg %p44
    %p51 = scmp.eq.s32.totalorder %s9, 3
    %p52 = por %p50, %p51
    %p53 = scmp.ne.s32.totalorder %s45, %s48
    %p54 = scmp.eq.s32.totalorder %s9, 0
    %p55 = por %p53, %p54
    %p56 = scmp.ne.s32.totalorder %s45, %s48
    %p57 = scmp.eq.s32.totalorder %s14, 3
    %p58 = por %p56, %p57
    %p59 = scmp.ne.s32.totalorder %s48, %s49
    %p60 = scmp.eq.s32.totalorder %s14, 0
    %p61 = por %p59, %p60
    %p62 = scmp.ne.s32.totalorder %s48, %s49
    %p63 = scmp.eq.s32.totalorder %s15, 3
    %p64 = por %p62, %p63
    %p66 = scmp.ne.s32.totalorder %s49, %s65
    %p67 = scmp.eq.s32.totalorder %s15, 0
    %p68 = por %p66, %p67
    %s69 = ssub.s32 %s9, %s16
    %p70 = scmp.eq.s32.totalorder %s69, 0
    %s72 = sadd.s32 %s71, 1
    %s73 = scalar_select %p70, %s71, %s72
    %p76 = pneg %p70
    %p77 = scmp.eq.s32.totalorder %s9, 3
    %p78 = por %p76, %p77
    %p79 = scmp.ne.s32.totalorder %s71, %s74
    %p80 = scmp.eq.s32.totalorder %s9, 0
    %p81 = por %p79, %p80
    %p82 = scmp.ne.s32.totalorder %s71, %s74
    %p83 = scmp.eq.s32.totalorder %s14, 3
    %p84 = por %p82, %p83
    %p85 = scmp.ne.s32.totalorder %s74, %s75
    %p86 = scmp.eq.s32.totalorder %s14, 0
    %p87 = por %p85, %p86
    %p88 = scmp.ne.s32.totalorder %s74, %s75
    %p89 = scmp.eq.s32.totalorder %s15, 3
    %p90 = por %p88, %p89
    %p92 = scmp.ne.s32.totalorder %s75, %s91
    %p93 = scmp.eq.s32.totalorder %s15, 0
    %p94 = por %p92, %p93
    %p95 = scmp.le.s32.totalorder 1, %s9
    %p96 = scmp.lt.s32.totalorder %s9, 5
    %p97 = pnand %p95, %p96
    %p98 = pneg %p97
    // Predicated region
    $region9: #{tpu_custom_call.1} parent=5 // pred_check
      _
    $region10: #{tpu_custom_call.1} parent=5 // pred_check_branch
      %100 = sbr.rel (%p97) target = $region12
    $region11: #{tpu_custom_call.1} parent=5 // pred_region
      %s101 = ssub.s32 %s9, 1
    $region12: #{tpu_custom_call.1} parent=5 // pred_fallthru
      _
    %p102 = scmp.lt.s32.totalorder %s9, 4
    // Predicated region
    $region13: #{tpu_custom_call.1} parent=5 // pred_check
      %p103 = pneg %p102
    $region14: #{tpu_custom_call.1} parent=5 // pred_check_branch
      %105 = sbr.rel (%p103) target = $region16
    $region15: #{tpu_custom_call.1} parent=5 // pred_region
      // Predicated region
      $region17: #{tpu_custom_call.1} parent=15 // pred_check
        %p106 = pneg %p29
      $region18: #{tpu_custom_call.1} parent=15 // pred_check_branch
        %108 = sbr.rel (%p106) target = $region20
      $region19: #{tpu_custom_call.1} parent=15 // pred_region
        %s109 = smul.u32 8, %s9
        %p110 = scmp.lt.s32.totalorder %s109, 31
        %s111 = scalar_select %p110, %s109, 31
        %s112 = smul.addr %s111, 8
        %s113 = scalar_lea.vmem %s0, %s112
        %s114 = smul.u32 8, %s9
      $region20: #{tpu_custom_call.1} parent=15 // pred_fallthru
        _
    $region16: #{tpu_custom_call.1} parent=5 // pred_fallthru
      _
    %p115 = scmp.le.s32.totalorder 1, %s9
    %p116 = scmp.lt.s32.totalorder %s9, 5
    %p117 = pnand %p115, %p116
    %p118 = pneg %p117
    // Predicated region
    $region21: #{tpu_custom_call.1} parent=5 // pred_check
      _
    $region22: #{tpu_custom_call.1} parent=5 // pred_check_branch
      %120 = sbr.rel (%p117) target = $region24
    $region23: #{tpu_custom_call.1} parent=5 // pred_region
      %s121 = ssub.s32 %s9, 1
      %s122 = smul.u32 8, %s14
      %p123 = scmp.lt.s32.totalorder %s122, 31
      %s124 = scalar_select %p123, %s122, 31
      %s125 = smul.addr %s124, 8
      %s126 = scalar_lea.vmem %s0, %s125
      %p127 = pneg %p35
      %p128 = pneg %p32
      %p129 = pneg %p61
      %p130 = pneg %p58
      %s131 = smul.u32 8, %s14
      %p132 = scmp.lt.s32.totalorder %s131, 31
      %s133 = scalar_select %p132, %s131, 31
      %s134 = smul.addr %s133, 8
      %s135 = scalar_lea.vmem %s1, %s134
      %p136 = pneg %p87
      %p137 = pneg %p84
      %s138 = smul.u32 8, %s14
      %p139 = scmp.lt.s32.totalorder %s138, 31
      %s140 = scalar_select %p139, %s138, 31
      %s141 = smul.addr %s140, 8
      %s142 = scalar_lea.vmem %s2, %s141
      %s143 = smul.u32 8, %s14
      %p144 = scmp.lt.s32.totalorder %s143, 31
      %s145 = scalar_select %p144, %s143, 31
      %s146 = smul.addr %s145, 8
      %s147 = scalar_lea.vmem %s0, %s146
      %s148 = smul.u32 8, %s14
      %s149 = smul.u32 8, %s14
      %p150 = scmp.lt.s32.totalorder %s149, 31
      %s151 = scalar_select %p150, %s149, 31
      %s152 = smul.addr %s151, 8
      %s153 = scalar_lea.vmem %s1, %s152
      %s154 = smul.u32 8, %s14
      %s155 = smul.u32 8, %s14
      %p156 = scmp.lt.s32.totalorder %s155, 31
      %s157 = scalar_select %p156, %s155, 31
      %s158 = smul.addr %s157, 8
      %s159 = scalar_lea.vmem %s2, %s158
      %s160 = smul.u32 8, %s14
      %v161 = vld [vmem:[%s147] sm:$0xff]
      %v162 = vld [vmem:[%s147 + $0x8] sm:$0xff]
      %v163 = vld [vmem:[%s147 + $0x10] sm:$0xff]
      %v164 = vld [vmem:[%s147 + $0x18] sm:$0xff]
      %v165 = vld [vmem:[%s147 + $0x20] sm:$0xff]
      %v166 = vld [vmem:[%s147 + $0x28] sm:$0xff]
      %v167 = vld [vmem:[%s147 + $0x30] sm:$0xff]
      %v168 = vld [vmem:[%s147 + $0x38] sm:$0xff]
      %v169 = vsub.f32 0.0, %v161
      %v170 = vsub.f32 0.0, %v162
      %v171 = vsub.f32 0.0, %v163
      %v172 = vsub.f32 0.0, %v164
      %v173 = vsub.f32 0.0, %v165
      %v174 = vsub.f32 0.0, %v166
      %v175 = vsub.f32 0.0, %v167
      %v176 = vsub.f32 0.0, %v168
      %v177 = vmul.f32 %v169, 1.442695
      %v178 = vpow.pop %v177
      %v179 = vmul.f32 %v170, 1.442695
      %v180 = vpow.pop %v179
      %v181 = vmul.f32 %v171, 1.442695
      %v182 = vpow.pop %v181
      %v183 = vmul.f32 %v172, 1.442695
      %v184 = vpow.pop %v183
      %v185 = vmul.f32 %v173, 1.442695
      %v186 = vpow.pop %v185
      %v187 = vmul.f32 %v174, 1.442695
      %v188 = vpow.pop %v187
      %v189 = vmul.f32 %v175, 1.442695
      %v190 = vpow.pop %v189
      %v191 = vmul.f32 %v176, 1.442695
      %v192 = vpow.pop %v191
      %v193 = vadd.f32 %v178, 1.0
      %v194 = vadd.f32 %v180, 1.0
      %v195 = vadd.f32 %v182, 1.0
      %v196 = vadd.f32 %v184, 1.0
      %v197 = vadd.f32 %v186, 1.0
      %v198 = vadd.f32 %v188, 1.0
      %v199 = vadd.f32 %v190, 1.0
      %v200 = vadd.f32 %v192, 1.0
      %v201 = vrcp.pop %v193
      %v202 = vmul.f32 1.0, %v201
      %v203 = vrcp.pop %v194
      %v204 = vmul.f32 1.0, %v203
      %v205 = vrcp.pop %v195
      %v206 = vmul.f32 1.0, %v205
      %v207 = vrcp.pop %v196
      %v208 = vmul.f32 1.0, %v207
      %v209 = vrcp.pop %v197
      %v210 = vmul.f32 1.0, %v209
      %v211 = vrcp.pop %v198
      %v212 = vmul.f32 1.0, %v211
      %v213 = vrcp.pop %v199
      %v214 = vmul.f32 1.0, %v213
      %v215 = vrcp.pop %v200
      %v216 = vmul.f32 1.0, %v215
      %vm217 = vcmask 64512
      %218 = vst.msk [vmem:[%s153] sm:$0xff] %vm217, %v202
      %219 = vst.msk [vmem:[%s153 + $0x8] sm:$0xff] %vm217, %v204
      %220 = vst.msk [vmem:[%s153 + $0x10] sm:$0xff] %vm217, %v206
      %221 = vst.msk [vmem:[%s153 + $0x18] sm:$0xff] %vm217, %v208
      %222 = vst.msk [vmem:[%s153 + $0x20] sm:$0xff] %vm217, %v210
      %223 = vst.msk [vmem:[%s153 + $0x28] sm:$0xff] %vm217, %v212
      %224 = vst.msk [vmem:[%s153 + $0x30] sm:$0xff] %vm217, %v214
      %225 = vst.msk [vmem:[%s153 + $0x38] sm:$0xff] %vm217, %v216
      %v226 = vsub.f32 1.0, %v202
      %v227 = vsub.f32 1.0, %v204
      %v228 = vsub.f32 1.0, %v206
      %v229 = vsub.f32 1.0, %v208
      %v230 = vsub.f32 1.0, %v210
      %v231 = vsub.f32 1.0, %v212
      %v232 = vsub.f32 1.0, %v214
      %v233 = vsub.f32 1.0, %v216
      %v234 = vmul.f32 %v202, %v226
      %v235 = vmul.f32 %v204, %v227
      %v236 = vmul.f32 %v206, %v228
      %v237 = vmul.f32 %v208, %v229
      %v238 = vmul.f32 %v210, %v230
      %v239 = vmul.f32 %v212, %v231
      %v240 = vmul.f32 %v214, %v232
      %v241 = vmul.f32 %v216, %v233
      %v242 = vlog2.pop %v234
      %v243 = vmul.f32 %v242, 0.6931472
      %v244 = vlog2.pop %v235
      %v245 = vmul.f32 %v244, 0.6931472
      %v246 = vlog2.pop %v236
      %v247 = vmul.f32 %v246, 0.6931472
      %v248 = vlog2.pop %v237
      %v249 = vmul.f32 %v248, 0.6931472
      %v250 = vlog2.pop %v238
      %v251 = vmul.f32 %v250, 0.6931472
      %v252 = vlog2.pop %v239
      %v253 = vmul.f32 %v252, 0.6931472
      %v254 = vlog2.pop %v240
      %v255 = vmul.f32 %v254, 0.6931472
      %v256 = vlog2.pop %v241
      %v257 = vmul.f32 %v256, 0.6931472
      %v258 = vsel %vm217, %v243, 0.0
      %259 = vadd.xlane.f32.xlu0 %v258
      %v260 = vpop.xlane.xlu0 %259
      %v261 = vsel %vm217, %v245, 0.0
      %262 = vadd.xlane.f32.xlu0 %v261
      %v263 = vpop.xlane.xlu0 %262
      %v264 = vsel %vm217, %v247, 0.0
      %265 = vadd.xlane.f32.xlu0 %v264
      %v266 = vpop.xlane.xlu0 %265
      %v267 = vsel %vm217, %v249, 0.0
      %268 = vadd.xlane.f32.xlu0 %v267
      %v269 = vpop.xlane.xlu0 %268
      %v270 = vsel %vm217, %v251, 0.0
      %271 = vadd.xlane.f32.xlu0 %v270
      %v272 = vpop.xlane.xlu0 %271
      %v273 = vsel %vm217, %v253, 0.0
      %274 = vadd.xlane.f32.xlu0 %v273
      %v275 = vpop.xlane.xlu0 %274
      %v276 = vsel %vm217, %v255, 0.0
      %277 = vadd.xlane.f32.xlu0 %v276
      %v278 = vpop.xlane.xlu0 %277
      %v279 = vsel %vm217, %v257, 0.0
      %280 = vadd.xlane.f32.xlu0 %v279
      %v281 = vpop.xlane.xlu0 %280
      %vm282 = vcmask 7168
      %283 = vst.msk [vmem:[%s159] sm:$0xff] %vm282, %v260
      %284 = vst.msk [vmem:[%s159 + $0x8] sm:$0xff] %vm282, %v263
      %285 = vst.msk [vmem:[%s159 + $0x10] sm:$0xff] %vm282, %v266
      %286 = vst.msk [vmem:[%s159 + $0x18] sm:$0xff] %vm282, %v269
      %287 = vst.msk [vmem:[%s159 + $0x20] sm:$0xff] %vm282, %v272
      %288 = vst.msk [vmem:[%s159 + $0x28] sm:$0xff] %vm282, %v275
      %289 = vst.msk [vmem:[%s159 + $0x30] sm:$0xff] %vm282, %v278
      %290 = vst.msk [vmem:[%s159 + $0x38] sm:$0xff] %vm282, %v281
      %s291 = smul.u32 8, %s14
      %p292 = scmp.lt.s32.totalorder %s291, 31
      %s293 = scalar_select %p292, %s291, 31
      %s294 = smul.addr %s293, 8
      %s295 = scalar_lea.vmem %s1, %s294
      %s296 = smul.u32 8, %s14
      %p297 = scmp.lt.s32.totalorder %s296, 31
      %s298 = scalar_select %p297, %s296, 31
      %s299 = smul.addr %s298, 8
      %s300 = scalar_lea.vmem %s2, %s299
      // Predicated region
      $region25: #{tpu_custom_call.1} parent=23 // pred_check
        %p301 = pneg %p58
      $region26: #{tpu_custom_call.1} parent=23 // pred_check_branch
        %303 = sbr.rel (%p301) target = $region28
      $region27: #{tpu_custom_call.1} parent=23 // pred_region
        %s304 = smul.u32 8, %s14
      $region28: #{tpu_custom_call.1} parent=23 // pred_fallthru
        _
      // Predicated region
      $region29: #{tpu_custom_call.1} parent=23 // pred_check
        %p305 = pneg %p84
      $region30: #{tpu_custom_call.1} parent=23 // pred_check_branch
        %307 = sbr.rel (%p305) target = $region32
      $region31: #{tpu_custom_call.1} parent=23 // pred_region
        %s308 = smul.u32 8, %s14
      $region32: #{tpu_custom_call.1} parent=23 // pred_fallthru
        _
    $region24: #{tpu_custom_call.1} parent=5 // pred_fallthru
      _
    %p309 = scmp.le.s32.totalorder 2, %s9
    // Predicated region
    $region33: #{tpu_custom_call.1} parent=5 // pred_check
      %p310 = pneg %p309
    $region34: #{tpu_custom_call.1} parent=5 // pred_check_branch
      %312 = sbr.rel (%p310) target = $region36
    $region35: #{tpu_custom_call.1} parent=5 // pred_region
      %s313 = ssub.s32 %s9, 2
      // Predicated region
      $region37: #{tpu_custom_call.1} parent=35 // pred_check
        %p314 = pneg %p64
      $region38: #{tpu_custom_call.1} parent=35 // pred_check_branch
        %316 = sbr.rel (%p314) target = $region40
      $region39: #{tpu_custom_call.1} parent=35 // pred_region
        %s317 = smul.u32 8, %s15
        %p318 = scmp.lt.s32.totalorder %s317, 31
        %s319 = scalar_select %p318, %s317, 31
        %s320 = smul.addr %s319, 8
        %s321 = scalar_lea.vmem %s1, %s320
      $region40: #{tpu_custom_call.1} parent=35 // pred_fallthru
        _
      // Predicated region
      $region41: #{tpu_custom_call.1} parent=35 // pred_check
        %p322 = pneg %p90
      $region42: #{tpu_custom_call.1} parent=35 // pred_check_branch
        %324 = sbr.rel (%p322) target = $region44
      $region43: #{tpu_custom_call.1} parent=35 // pred_region
        %s325 = smul.u32 8, %s15
        %p326 = scmp.lt.s32.totalorder %s325, 31
        %s327 = scalar_select %p326, %s325, 31
        %s328 = smul.addr %s327, 8
        %s329 = scalar_lea.vmem %s2, %s328
      $region44: #{tpu_custom_call.1} parent=35 // pred_fallthru
        _
    $region36: #{tpu_custom_call.1} parent=5 // pred_fallthru
      _
  $region6: #{tpu_custom_call.1} parent=0 // loop_footer
    %s13 = sadd.s32 1, %s9
  $region7: #{tpu_custom_call.1} parent=0 // loop_footer_branch
    %8 = sbr.rel target = $region3
  $region8: #{tpu_custom_call.1} parent=0 // loop_exit
    _

</llo_original>
